<compile_context>
chip_gen: v5e
topology: v5e:2x2
jax: 0.10.0
libtpu: 0.0.40
codegen_flags: <defaults>
</compile_context>

<pallas_src>
import functools

import jax
import jax.numpy as jnp
from jax.experimental import pallas as pl
from jax.experimental.pallas import tpu as pltpu


def _ggnn_prop_kernel(
    edges_ref,      # (Bt, N, 2*NE)   bf16
    state_in_ref,   # (Bt, NE, D)     bf16
    state_out_ref,  # (Bt, NE, D)     bf16
    state_cur_ref,  # (Bt, N, D)      f32
    w_a_in_ref,     # (D, 3D)  bf16   fused [r|z|t] columns, a_in term
    w_a_out_ref,    # (D, 3D)  bf16   fused [r|z|t] columns, a_out term
    w_cur_rz_ref,   # (D, 2D)  f32    fused [r|z] columns, state_cur term
    w_cur_t_ref,    # (D, D)   f32    transform columns, (r*state_cur) term
    b_rz_ref,       # (1, 2D)  f32
    b_t_ref,        # (1, D)   f32
    out_ref,        # (Bt, N, D)
    p_scratch,      # (Bt, 2NE, 3D) f32 VMEM scratch
    *, n_node, n_edge_types, state_dim,
):
    NE = n_node * n_edge_types
    D = state_dim
    Bt = out_ref.shape[0]
    rows = Bt * n_node
    srows = Bt * NE

    # ---- a-path: fold the gate projections into the edge contraction --------
    # P_in = state_in @ W_a_in, P_out = state_out @ W_a_out  (bf16 x bf16, f32 acc).
    p_in = jnp.dot(state_in_ref[...].reshape(srows, D), w_a_in_ref[...],
                   preferred_element_type=jnp.float32)
    p_out = jnp.dot(state_out_ref[...].reshape(srows, D), w_a_out_ref[...],
                    preferred_element_type=jnp.float32)
    # Assemble P = [P_in ; P_out] along the NE axis (sublane-aligned static stores).
    p_scratch[:, :NE, :] = p_in.reshape(Bt, NE, 3 * D)
    p_scratch[:, NE:, :] = p_out.reshape(Bt, NE, 3 * D)

    # One batched einsum against the *full* edges tensor (no lane slicing):
    #   a_proj = a_in @ W_a_in + a_out @ W_a_out, columns [reset | update | transform].
    a_proj = jnp.einsum(
        "bne,bek->bnk",
        edges_ref[...].astype(jnp.float32), p_scratch[...],
        preferred_element_type=jnp.float32).reshape(rows, 3 * D)

    # Flatten so the cur-path GEMMs see a large M (N is a multiple of 8 -> free).
    cur_f = state_cur_ref[...].astype(jnp.float32).reshape(rows, D)

    # Reset / update gates: one fused (rows, 2D) sigmoid.
    rz = jax.nn.sigmoid(
        a_proj[:, :2 * D]
        + jnp.dot(cur_f, w_cur_rz_ref[...], preferred_element_type=jnp.float32)
        + b_rz_ref[...])
    r = rz[:, :D]
    z = rz[:, D:]

    # Transform branch with LeakyReLU(0.01) (PyTorch nn.LeakyReLU default).
    h_pre = (a_proj[:, 2 * D:]
             + jnp.dot(r * cur_f, w_cur_t_ref[...], preferred_element_type=jnp.float32)
             + b_t_ref[...])
    h_hat = jnp.where(h_pre >= 0, h_pre, 0.01 * h_pre)

    out = (1.0 - z) * cur_f + z * h_hat
    out_ref[...] = out.reshape(Bt, n_node, D).astype(out_ref.dtype)


def _choose_batch_block(B, n_node, n_edge_types, state_dim,
                        target_rows=512, vmem_budget_bytes=16 << 20):
    """Batch block: fill the MXU M dim and the VMEM budget, keep grid >= 2 steps."""
    NE = n_node * n_edge_types
    D = state_dim
    # Bytes per batch element of the streamed blocks (x2 for double buffering).
    per_b = 2 * (n_node * 2 * NE * 2      # edges   (bf16)
                 + 2 * NE * D * 2         # state_in + state_out (bf16)
                 + n_node * D * 4         # state_cur (f32)
                 + n_node * D * 4)        # output    (f32)
    bt = max(1, min(target_rows // max(n_node, 1),
                    vmem_budget_bytes // max(per_b, 1),
                    B))
    # >= 2 grid steps when possible: both v7x TensorCores get work and the
    # grid-level DMA pipeline has something to overlap.
    if B >= 2:
        bt = min(bt, (B + 1) // 2)
    return max(1, bt)


def ggnn_propagator(edges, state_in, state_out, state_cur, params,
                    *, n_node, n_edge_types, state_dim,
                    mxu_dtype=jnp.bfloat16, batch_block=None):
    B = edges.shape[0]
    N, NE, D = n_node, n_node * n_edge_types, state_dim
    Bt = (batch_block if batch_block is not None
          else _choose_batch_block(B, N, n_edge_types, D))

    # ---- wrapper-side weight fusion (done once, outside the kernel) ----
    w_r, w_z, w_t = params["w_r"], params["w_z"], params["w_t"]   # (3D, D) each
    w_a_in = jnp.concatenate([w_r[:D], w_z[:D], w_t[:D]], axis=1).astype(mxu_dtype)
    w_a_out = jnp.concatenate(
        [w_r[D:2 * D], w_z[D:2 * D], w_t[D:2 * D]], axis=1).astype(mxu_dtype)
    w_cur_rz = jnp.concatenate([w_r[2 * D:], w_z[2 * D:]], axis=1)   # (D, 2D) f32
    w_cur_t = w_t[2 * D:]                                            # (D, D)  f32
    b_rz = jnp.concatenate([params["b_r"], params["b_z"]], axis=1)   # (1, 2D)
    b_t = params["b_t"]                                              # (1, D)

    # ---- low-precision operands for the dominant streams ----
    edges_c = edges.astype(mxu_dtype)
    state_in_c = state_in.astype(mxu_dtype)
    state_out_c = state_out.astype(mxu_dtype)
    state_cur_c = state_cur.astype(jnp.float32)

    # ---- pad the batch so any B works with the chosen block (no Bt=1 fallback) ----
    num_blocks = -(-B // Bt)
    B_pad = num_blocks * Bt
    if B_pad != B:
        pad = B_pad - B
        padw = lambda x: jnp.pad(x, ((0, pad),) + ((0, 0),) * (x.ndim - 1))
        edges_c = padw(edges_c)
        state_in_c = padw(state_in_c)
        state_out_c = padw(state_out_c)
        state_cur_c = padw(state_cur_c)

    kernel = functools.partial(
        _ggnn_prop_kernel, n_node=N, n_edge_types=n_edge_types, state_dim=D)

    def batch_spec(shape):
        # Bt batch elements per grid step; trailing dims cover the full array.
        return pl.BlockSpec((Bt,) + shape, lambda b: (b,) + (0,) * len(shape))

    def weight_spec(shape):
        # Grid-invariant weights (same block every step -> fetched once).
        return pl.BlockSpec(shape, lambda b: (0,) * len(shape))

    out = pl.pallas_call(
        kernel,
        out_shape=jax.ShapeDtypeStruct((B_pad, N, D), state_cur.dtype),
        grid=(num_blocks,),
        in_specs=[
            batch_spec((N, 2 * NE)),     # edges
            batch_spec((NE, D)),         # state_in
            batch_spec((NE, D)),         # state_out
            batch_spec((N, D)),          # state_cur
            weight_spec((D, 3 * D)),     # W_a_in
            weight_spec((D, 3 * D)),     # W_a_out
            weight_spec((D, 2 * D)),     # W_cur_rz
            weight_spec((D, D)),         # W_cur_t
            weight_spec((1, 2 * D)),     # b_rz
            weight_spec((1, D)),         # b_t
        ],
        out_specs=batch_spec((N, D)),
        scratch_shapes=[pltpu.VMEM((Bt, 2 * NE, 3 * D), jnp.float32)],
        compiler_params=pltpu.CompilerParams(
            dimension_semantics=("parallel",),
            vmem_limit_bytes=32 * 1024 * 1024),
    )(edges_c, state_in_c, state_out_c, state_cur_c,
      w_a_in, w_a_out, w_cur_rz, w_cur_t, b_rz, b_t)

    return out[:B] if B_pad != B else out


def _reference(edges, state_in, state_out, state_cur, params,
               *, n_node, n_edge_types, state_dim):
    """Pure-JAX replica of GGNNPropogator.forward."""
    NE = n_node * n_edge_types
    edges_in = edges[:, :, :NE]
    edges_out = edges[:, :, NE:]
    a_in = jnp.einsum("bne,bed->bnd", edges_in, state_in)
    a_out = jnp.einsum("bne,bed->bnd", edges_out, state_out)
    a = jnp.concatenate([a_in, a_out, state_cur], axis=2)
    r = jax.nn.sigmoid(a @ params["w_r"] + params["b_r"][0])
    z = jax.nn.sigmoid(a @ params["w_z"] + params["b_z"][0])
    joined = jnp.concatenate([a_in, a_out, r * state_cur], axis=2)
    h_pre = joined @ params["w_t"] + params["b_t"][0]
    h_hat = jnp.where(h_pre >= 0, h_pre, 0.01 * h_pre)
    return (1.0 - z) * state_cur + z * h_hat


if __name__ == "__main__":
    # Small, module-consistent shapes.
    B = 2            # batch
    D = 32           # state_dim
    N = 8            # n_node (== nodes argument)
    E = 2            # n_edge_types
    NE = N * E

    key = jax.random.PRNGKey(0)
    keys = jax.random.split(key, 10)

    # Deterministic synthetic parameters (PyTorch Linear-style uniform init),
    # stored pre-transposed as (in_features=3D, out_features=D).
    bound = 1.0 / jnp.sqrt(3.0 * D)
    params = {
        "w_r": jax.random.uniform(keys[0], (3 * D, D), jnp.float32, -bound, bound),
        "b_r": jax.random.uniform(keys[1], (1, D), jnp.float32, -bound, bound),
        "w_z": jax.random.uniform(keys[2], (3 * D, D), jnp.float32, -bound, bound),
        "b_z": jax.random.uniform(keys[3], (1, D), jnp.float32, -bound, bound),
        "w_t": jax.random.uniform(keys[4], (3 * D, D), jnp.float32, -bound, bound),
        "b_t": jax.random.uniform(keys[5], (1, D), jnp.float32, -bound, bound),
    }

    edges = jax.random.uniform(keys[6], (B, N, 2 * NE), jnp.float32)
    state_in = jax.random.normal(keys[7], (B, NE, D), jnp.float32)
    state_out = jax.random.normal(keys[8], (B, NE, D), jnp.float32)
    state_cur = jax.random.normal(keys[9], (B, N, D), jnp.float32)

    out = ggnn_propagator(edges, state_in, state_out, state_cur, params,
                          n_node=N, n_edge_types=E, state_dim=D)
    out = jax.block_until_ready(out)

    # Reference sees the same bf16-rounded values the kernel's MXU path sees:
    # edges / state_in / state_out and the a-path weight rows (first 2D rows of
    # each gate weight). The cur-path weights, biases and all gate math stay f32
    # in both, so only f32 re-association noise remains.
    _q = lambda x: x.astype(jnp.bfloat16).astype(jnp.float32)
    params_q = dict(params)
    for k in ("w_r", "w_z", "w_t"):
        w = params[k]
        params_q[k] = jnp.concatenate([_q(w[:2 * D]), w[2 * D:]], axis=0)
    ref = _reference(_q(edges), _q(state_in), _q(state_out), state_cur, params_q,
                     n_node=N, n_edge_types=E, state_dim=D)

    assert out.shape == (B, N, D)
    assert jnp.allclose(out, ref, atol=1e-3, rtol=1e-3), "mismatch vs pure-JAX reference"

    print("KERNEL_OK")
</pallas_src>

<mosaic_0001>
module attributes {stable_mosaic.version = 11 : i64} {
  func.func @_ggnn_prop_kernel(%arg0: i32, %arg1: memref<1x8x32xbf16, #tpu.memory_space<vmem>>, %arg2: memref<1x16x32xbf16, #tpu.memory_space<vmem>>, %arg3: memref<1x16x32xbf16, #tpu.memory_space<vmem>>, %arg4: memref<1x8x32xf32, #tpu.memory_space<vmem>>, %arg5: memref<32x96xbf16, #tpu.memory_space<vmem>>, %arg6: memref<32x96xbf16, #tpu.memory_space<vmem>>, %arg7: memref<32x64xf32, #tpu.memory_space<vmem>>, %arg8: memref<32x32xf32, #tpu.memory_space<vmem>>, %arg9: memref<1x64xf32, #tpu.memory_space<vmem>>, %arg10: memref<1x32xf32, #tpu.memory_space<vmem>>, %arg11: memref<1x8x32xf32, #tpu.memory_space<vmem>>, %arg12: memref<1x32x96xf32, #tpu.memory_space<vmem>>) attributes {dimension_semantics = [#tpu.dimension_semantics<parallel>], iteration_bounds = array<i64: 2>, scalar_prefetch = 0 : i64, scratch_operands = 1 : i64, tpu.core_type = #tpu.core_type<tc>, window_params = [{transform_indices = @transform_0, window_bounds = array<i64: 1, 8, 32>}, {transform_indices = @transform_1, window_bounds = array<i64: 1, 16, 32>}, {transform_indices = @transform_2, window_bounds = array<i64: 1, 16, 32>}, {transform_indices = @transform_3, window_bounds = array<i64: 1, 8, 32>}, {pipeline_mode = #tpu.pipeline_mode<synchronous>, transform_indices = @transform_4, window_bounds = array<i64: 32, 96>}, {pipeline_mode = #tpu.pipeline_mode<synchronous>, transform_indices = @transform_5, window_bounds = array<i64: 32, 96>}, {pipeline_mode = #tpu.pipeline_mode<synchronous>, transform_indices = @transform_6, window_bounds = array<i64: 32, 64>}, {pipeline_mode = #tpu.pipeline_mode<synchronous>, transform_indices = @transform_7, window_bounds = array<i64: 32, 32>}, {pipeline_mode = #tpu.pipeline_mode<synchronous>, transform_indices = @transform_8, window_bounds = array<i64: 1, 64>}, {pipeline_mode = #tpu.pipeline_mode<synchronous>, transform_indices = @transform_9, window_bounds = array<i64: 1, 32>}, {transform_indices = @transform_10, window_bounds = array<i64: 1, 8, 32>}]} {
    %c0 = arith.constant 0 : index
    %c0_0 = arith.constant 0 : index
    %c0_1 = arith.constant 0 : index
    %0 = vector.load %arg2[%c0, %c0_0, %c0_1] : memref<1x16x32xbf16, #tpu.memory_space<vmem>>, vector<1x16x32xbf16>
    %1 = vector.shape_cast %0 : vector<1x16x32xbf16> to vector<16x32xbf16>
    %c0_2 = arith.constant 0 : index
    %c0_3 = arith.constant 0 : index
    %2 = vector.load %arg5[%c0_2, %c0_3] : memref<32x96xbf16, #tpu.memory_space<vmem>>, vector<32x96xbf16>
    %cst = arith.constant dense<0.000000e+00> : vector<16x96xf32>
    %3 = tpu.matmul %1, %2, %cst {dimension_numbers = #tpu.dot_dimension_numbers<[1], [0], [0], [1], [0, 0, 1, 1], [], []>} : vector<16x32xbf16>, vector<32x96xbf16>, vector<16x96xf32> -> vector<16x96xf32>
    %c0_4 = arith.constant 0 : index
    %c0_5 = arith.constant 0 : index
    %c0_6 = arith.constant 0 : index
    %4 = vector.load %arg3[%c0_4, %c0_5, %c0_6] : memref<1x16x32xbf16, #tpu.memory_space<vmem>>, vector<1x16x32xbf16>
    %5 = vector.shape_cast %4 : vector<1x16x32xbf16> to vector<16x32xbf16>
    %c0_7 = arith.constant 0 : index
    %c0_8 = arith.constant 0 : index
    %6 = vector.load %arg6[%c0_7, %c0_8] : memref<32x96xbf16, #tpu.memory_space<vmem>>, vector<32x96xbf16>
    %cst_9 = arith.constant dense<0.000000e+00> : vector<16x96xf32>
    %7 = tpu.matmul %5, %6, %cst_9 {dimension_numbers = #tpu.dot_dimension_numbers<[1], [0], [0], [1], [0, 0, 1, 1], [], []>} : vector<16x32xbf16>, vector<32x96xbf16>, vector<16x96xf32> -> vector<16x96xf32>
    %8 = vector.shape_cast %3 : vector<16x96xf32> to vector<1x16x96xf32>
    %c0_10 = arith.constant 0 : index
    %c0_11 = arith.constant 0 : index
    %c0_12 = arith.constant 0 : index
    %9 = vector.load %arg12[%c0_10, %c0_11, %c0_12] : memref<1x32x96xf32, #tpu.memory_space<vmem>>, vector<1x16x96xf32>
    tpu.vector_store %arg12[%c0_10, %c0_11, %c0_12], %8 {strides = array<i32>} : memref<1x32x96xf32, #tpu.memory_space<vmem>>, vector<1x16x96xf32>,
    %10 = vector.shape_cast %7 : vector<16x96xf32> to vector<1x16x96xf32>
    %c0_13 = arith.constant 0 : index
    %c16 = arith.constant 16 : index
    %c0_14 = arith.constant 0 : index
    %11 = vector.load %arg12[%c0_13, %c16, %c0_14] : memref<1x32x96xf32, #tpu.memory_space<vmem>>, vector<1x16x96xf32>
    tpu.vector_store %arg12[%c0_13, %c16, %c0_14], %10 {strides = array<i32>} : memref<1x32x96xf32, #tpu.memory_space<vmem>>, vector<1x16x96xf32>,
    %c0_15 = arith.constant 0 : index
    %c0_16 = arith.constant 0 : index
    %c0_17 = arith.constant 0 : index
    %12 = vector.load %arg1[%c0_15, %c0_16, %c0_17] : memref<1x8x32xbf16, #tpu.memory_space<vmem>>, vector<1x8x32xbf16>
    %13 = arith.extf %12 : vector<1x8x32xbf16> to vector<1x8x32xf32>
    %c0_18 = arith.constant 0 : index
    %c0_19 = arith.constant 0 : index
    %c0_20 = arith.constant 0 : index
    %14 = vector.load %arg12[%c0_18, %c0_19, %c0_20] : memref<1x32x96xf32, #tpu.memory_space<vmem>>, vector<1x32x96xf32>
    "tpu.trace_start"() <{level = 10 : i32, message = "bne,bek->bnk"}> : () -> ()
    %cst_21 = arith.constant dense<0.000000e+00> : vector<1x8x96xf32>
    %15 = tpu.matmul %13, %14, %cst_21 {dimension_numbers = #tpu.dot_dimension_numbers<[2], [1], [1], [2], [0, 0, 0, 1, 1, 2], [0], [0]>} : vector<1x8x32xf32>, vector<1x32x96xf32>, vector<1x8x96xf32> -> vector<1x8x96xf32>
    "tpu.trace_stop"() : () -> ()
    %16 = vector.shape_cast %15 : vector<1x8x96xf32> to vector<8x96xf32>
    %c0_22 = arith.constant 0 : index
    %c0_23 = arith.constant 0 : index
    %c0_24 = arith.constant 0 : index
    %17 = vector.load %arg4[%c0_22, %c0_23, %c0_24] : memref<1x8x32xf32, #tpu.memory_space<vmem>>, vector<1x8x32xf32>
    %18 = vector.shape_cast %17 : vector<1x8x32xf32> to vector<8x32xf32>
    %19 = vector.extract_strided_slice %16 {offsets = [0, 0], sizes = [8, 64], strides = [1, 1]} : vector<8x96xf32> to vector<8x64xf32>
    %c0_25 = arith.constant 0 : index
    %c0_26 = arith.constant 0 : index
    %20 = vector.load %arg7[%c0_25, %c0_26] : memref<32x64xf32, #tpu.memory_space<vmem>>, vector<32x64xf32>
    %cst_27 = arith.constant dense<0.000000e+00> : vector<8x64xf32>
    %21 = tpu.matmul %18, %20, %cst_27 {dimension_numbers = #tpu.dot_dimension_numbers<[1], [0], [0], [1], [0, 0, 1, 1], [], []>} : vector<8x32xf32>, vector<32x64xf32>, vector<8x64xf32> -> vector<8x64xf32>
    %22 = arith.addf %19, %21 : vector<8x64xf32>
    %c0_28 = arith.constant 0 : index
    %c0_29 = arith.constant 0 : index
    %23 = vector.load %arg9[%c0_28, %c0_29] : memref<1x64xf32, #tpu.memory_space<vmem>>, vector<1x64xf32>
    %24 = vector.broadcast %23 : vector<1x64xf32> to vector<8x64xf32>
    %25 = arith.addf %22, %24 : vector<8x64xf32>
    %26 = arith.negf %25 : vector<8x64xf32>
    %27 = math.exp %26 : vector<8x64xf32>
    %cst_30 = arith.constant 1.000000e+00 : f32
    %28 = vector.broadcast %cst_30 : f32 to vector<8x64xf32>
    %29 = arith.addf %28, %27 : vector<8x64xf32>
    %30 = arith.divf %28, %29 : vector<8x64xf32>
    %31 = vector.extract_strided_slice %30 {offsets = [0, 0], sizes = [8, 32], strides = [1, 1]} : vector<8x64xf32> to vector<8x32xf32>
    %32 = vector.extract_strided_slice %30 {offsets = [0, 32], sizes = [8, 32], strides = [1, 1]} : vector<8x64xf32> to vector<8x32xf32>
    %33 = vector.extract_strided_slice %16 {offsets = [0, 64], sizes = [8, 32], strides = [1, 1]} : vector<8x96xf32> to vector<8x32xf32>
    %34 = arith.mulf %31, %18 : vector<8x32xf32>
    %c0_31 = arith.constant 0 : index
    %c0_32 = arith.constant 0 : index
    %35 = vector.load %arg8[%c0_31, %c0_32] : memref<32x32xf32, #tpu.memory_space<vmem>>, vector<32x32xf32>
    %cst_33 = arith.constant dense<0.000000e+00> : vector<8x32xf32>
    %36 = tpu.matmul %34, %35, %cst_33 {dimension_numbers = #tpu.dot_dimension_numbers<[1], [0], [0], [1], [0, 0, 1, 1], [], []>} : vector<8x32xf32>, vector<32x32xf32>, vector<8x32xf32> -> vector<8x32xf32>
    %37 = arith.addf %33, %36 : vector<8x32xf32>
    %c0_34 = arith.constant 0 : index
    %c0_35 = arith.constant 0 : index
    %38 = vector.load %arg10[%c0_34, %c0_35] : memref<1x32xf32, #tpu.memory_space<vmem>>, vector<1x32xf32>
    %39 = vector.broadcast %38 : vector<1x32xf32> to vector<8x32xf32>
    %40 = arith.addf %37, %39 : vector<8x32xf32>
    %cst_36 = arith.constant 0.000000e+00 : f32
    %41 = vector.broadcast %cst_36 : f32 to vector<8x32xf32>
    %42 = arith.cmpf oge, %40, %41 : vector<8x32xf32>
    %cst_37 = arith.constant 0.00999999977 : f32
    %43 = vector.broadcast %cst_37 : f32 to vector<8x32xf32>
    %44 = arith.mulf %43, %40 : vector<8x32xf32>
    %45 = arith.select %42, %40, %44 : vector<8x32xi1>, vector<8x32xf32>
    %cst_38 = arith.constant 1.000000e+00 : f32
    %46 = vector.broadcast %cst_38 : f32 to vector<8x32xf32>
    %47 = arith.subf %46, %32 : vector<8x32xf32>
    %48 = arith.mulf %47, %18 : vector<8x32xf32>
    %49 = arith.mulf %32, %45 : vector<8x32xf32>
    %50 = arith.addf %48, %49 : vector<8x32xf32>
    %51 = vector.shape_cast %50 : vector<8x32xf32> to vector<1x8x32xf32>
    %c0_39 = arith.constant 0 : index
    %c0_40 = arith.constant 0 : index
    %c0_41 = arith.constant 0 : index
    %52 = vector.load %arg11[%c0_39, %c0_40, %c0_41] : memref<1x8x32xf32, #tpu.memory_space<vmem>>, vector<1x8x32xf32>
    tpu.vector_store %arg11[%c0_39, %c0_40, %c0_41], %51 {strides = array<i32>} : memref<1x8x32xf32, #tpu.memory_space<vmem>>, vector<1x8x32xf32>,
    return
  }
  func.func @transform_0(%arg0: i32) -> (i32, i32, i32) {
    %c0_i32 = arith.constant 0 : i32
    %c0_i32_0 = arith.constant 0 : i32
    %c0_i32_1 = arith.constant 0 : i32
    return %arg0, %c0_i32, %c0_i32_0 : i32, i32, i32
  }
  func.func @transform_1(%arg0: i32) -> (i32, i32, i32) {
    %c0_i32 = arith.constant 0 : i32
    %c0_i32_0 = arith.constant 0 : i32
    %c0_i32_1 = arith.constant 0 : i32
    return %arg0, %c0_i32, %c0_i32_0 : i32, i32, i32
  }
  func.func @transform_2(%arg0: i32) -> (i32, i32, i32) {
    %c0_i32 = arith.constant 0 : i32
    %c0_i32_0 = arith.constant 0 : i32
    %c0_i32_1 = arith.constant 0 : i32
    return %arg0, %c0_i32, %c0_i32_0 : i32, i32, i32
  }
  func.func @transform_3(%arg0: i32) -> (i32, i32, i32) {
    %c0_i32 = arith.constant 0 : i32
    %c0_i32_0 = arith.constant 0 : i32
    %c0_i32_1 = arith.constant 0 : i32
    return %arg0, %c0_i32, %c0_i32_0 : i32, i32, i32
  }
  func.func @transform_4(%arg0: i32) -> (i32, i32) {
    %c0_i32 = arith.constant 0 : i32
    %c0_i32_0 = arith.constant 0 : i32
    %c0_i32_1 = arith.constant 0 : i32
    return %c0_i32, %c0_i32_0 : i32, i32
  }
  func.func @transform_5(%arg0: i32) -> (i32, i32) {
    %c0_i32 = arith.constant 0 : i32
    %c0_i32_0 = arith.constant 0 : i32
    %c0_i32_1 = arith.constant 0 : i32
    return %c0_i32, %c0_i32_0 : i32, i32
  }
  func.func @transform_6(%arg0: i32) -> (i32, i32) {
    %c0_i32 = arith.constant 0 : i32
    %c0_i32_0 = arith.constant 0 : i32
    %c0_i32_1 = arith.constant 0 : i32
    return %c0_i32, %c0_i32_0 : i32, i32
  }
  func.func @transform_7(%arg0: i32) -> (i32, i32) {
    %c0_i32 = arith.constant 0 : i32
    %c0_i32_0 = arith.constant 0 : i32
    %c0_i32_1 = arith.constant 0 : i32
    return %c0_i32, %c0_i32_0 : i32, i32
  }
  func.func @transform_8(%arg0: i32) -> (i32, i32) {
    %c0_i32 = arith.constant 0 : i32
    %c0_i32_0 = arith.constant 0 : i32
    %c0_i32_1 = arith.constant 0 : i32
    return %c0_i32, %c0_i32_0 : i32, i32
  }
  func.func @transform_9(%arg0: i32) -> (i32, i32) {
    %c0_i32 = arith.constant 0 : i32
    %c0_i32_0 = arith.constant 0 : i32
    %c0_i32_1 = arith.constant 0 : i32
    return %c0_i32, %c0_i32_0 : i32, i32
  }
  func.func @transform_10(%arg0: i32) -> (i32, i32, i32) {
    %c0_i32 = arith.constant 0 : i32
    %c0_i32_0 = arith.constant 0 : i32
    %c0_i32_1 = arith.constant 0 : i32
    return %arg0, %c0_i32, %c0_i32_0 : i32, i32, i32
  }
}

</mosaic_0001>

<llo_original>
// kernel: tpu_custom_call.1
$region0: #{tpu_custom_call.1}
  #allocation0 [shape = 'u32[]', space=smem, size = 0x4, offset = 0x4, fixed_abs, tag = 'smem constant byte address 0x4 - core index']
  #allocation1 [shape = 'u32[72,128]{1,0:T(1,128)}', space=vmem, size = 0x9000, scoped, tag = 'internal scratch']
  #allocation2 [shape = 'f32[1,32,96]{2,1,0:T(8,128)}', space=vmem, size = 0x4000, scoped, tag = 'scratch operand']
  %s0 = inlined_call_operand.hbm [shape: bf16[2,8,32], index: 0, kind: input, shape index: {}]
  %s1 = inlined_call_operand.hbm [shape: bf16[2,16,32], index: 1, kind: input, shape index: {}]
  %s2 = inlined_call_operand.hbm [shape: bf16[2,16,32], index: 2, kind: input, shape index: {}]
  %s3 = inlined_call_operand.hbm [shape: f32[2,8,32], index: 3, kind: input, shape index: {}]
  %s4 = inlined_call_operand.hbm [shape: bf16[32,96], index: 4, kind: input, shape index: {}]
  %s5 = inlined_call_operand.hbm [shape: bf16[32,96], index: 5, kind: input, shape index: {}]
  %s6 = inlined_call_operand.hbm [shape: f32[32,64], index: 6, kind: input, shape index: {}]
  %s7 = inlined_call_operand.hbm [shape: f32[32,32], index: 7, kind: input, shape index: {}]
  %s8 = inlined_call_operand.vmem [shape: f32[1,64], index: 8, kind: input, shape index: {}]
  %s9 = inlined_call_operand.vmem [shape: f32[1,32], index: 9, kind: input, shape index: {}]
  %s10 = inlined_call_operand.hbm [shape: f32[2,8,32], index: 10, kind: output, shape index: {}]
  %s11 = sld [smem:[#allocation0]]
  $region105: #{tpu_custom_call.1} parent=0
    _
  %s13 = ssub.s32 1, %s11
  %s14 = scalar_select 0, %s13, %s11
  $region1: #{tpu_custom_call.1} parent=0
    #allocation3 [shape = 'u8[4096]{0}', space=vmem, size = 0x1000, scoped, tag = 'input window, operand 0']
    #allocation4 [shape = 's32[2]{0}', space=sflag, size = 0x8, scoped, tag = 'scoped memory for tpu_custom_call.1']
    #allocation5 [shape = 's32[2]{0}', space=sflag, size = 0x8, scoped, tag = 'scoped memory for tpu_custom_call.1']
    #allocation6 [shape = 'u8[8192]{0}', space=vmem, size = 0x2000, scoped, tag = 'input window, operand 1']
    #allocation7 [shape = 's32[2]{0}', space=sflag, size = 0x8, scoped, tag = 'scoped memory for tpu_custom_call.1']
    #allocation8 [shape = 'u8[8192]{0}', space=vmem, size = 0x2000, scoped, tag = 'input window, operand 2']
    #allocation9 [shape = 'u8[8192]{0}', space=vmem, size = 0x2000, scoped, tag = 'input window, operand 3']
    #allocation10 [shape = 's32[2]{0}', space=sflag, size = 0x8, scoped, tag = 'scoped memory for tpu_custom_call.1']
    #allocation11 [shape = 'u8[8192]{0}', space=vmem, size = 0x2000, scoped, tag = 'input window, operand 4, single buffered']
    #allocation12 [shape = 'u8[8192]{0}', space=vmem, size = 0x2000, scoped, tag = 'input window, operand 5, single buffered']
    #allocation13 [shape = 's32[1]{0}', space=sflag, size = 0x4, scoped, tag = 'scoped memory for tpu_custom_call.1']
    #allocation14 [shape = 'u8[16384]{0}', space=vmem, size = 0x4000, scoped, tag = 'input window, operand 6, single buffered']
    #allocation15 [shape = 'u8[16384]{0}', space=vmem, size = 0x4000, scoped, tag = 'input window, operand 7, single buffered']
    #allocation16 [shape = 's32[1]{0}', space=sflag, size = 0x4, scoped, tag = 'scoped memory for tpu_custom_call.1']
    #allocation17 [shape = 'u8[8192]{0}', space=vmem, size = 0x2000, scoped, tag = 'output window, operand 0']
    %15 = vsyncpa [#allocation4], 0
    %s16 = scalar_lea.sflag [#allocation4], 1
    %17 = vsyncpa %s16, 0
    %18 = vsyncpa [#allocation7], 0
    %s19 = scalar_lea.sflag [#allocation7], 1
    %20 = vsyncpa %s19, 0
    %21 = vsyncpa [#allocation10], 0
    %s22 = scalar_lea.sflag [#allocation10], 1
    %23 = vsyncpa %s22, 0
    %24 = vsyncpa [#allocation13], 0
    %25 = vsyncpa [#allocation16], 0
    %26 = vsyncpa [#allocation5], 0
    %s27 = scalar_lea.sflag [#allocation5], 1
    %28 = vsyncpa %s27, 0
    loop: start=0, step=1, limit=4
    $region2: #{tpu_custom_call.1} parent=1 // loop_pre_header
      _
    $region3: #{tpu_custom_call.1} parent=1 // loop_header
      %s30 = sphi 0, %s34
      %p31 = scmp.ge.s32.totalorder %s30, 4
      %s40 = sphi 0, %s42
      %s43 = sphi 0, %s40
      %s44 = sphi 0, %s43
      %s60 = sphi 0, %s44
      %s66 = sphi 0, %s68
      %s69 = sphi 0, %s66
      %s70 = sphi 0, %s69
      %s86 = sphi 0, %s70
      %s92 = sphi 0, %s94
      %s95 = sphi 0, %s92
      %s96 = sphi 0, %s95
      %s112 = sphi 0, %s96
      %s118 = sphi 0, %s120
      %s121 = sphi 0, %s118
      %s122 = sphi 0, %s121
      %s138 = sphi 0, %s122
      %s142 = sphi 0, %s142
      %s144 = sphi 0, %s142
      %s145 = sphi 0, %s144
      %s159 = sphi 0, %s145
      %s163 = sphi 0, %s163
      %s165 = sphi 0, %s163
      %s166 = sphi 0, %s165
      %s180 = sphi 0, %s166
      %s184 = sphi 0, %s184
      %s186 = sphi 0, %s184
      %s187 = sphi 0, %s186
      %s201 = sphi 0, %s187
      %s205 = sphi 0, %s205
      %s207 = sphi 0, %s205
      %s208 = sphi 0, %s207
      %s222 = sphi 0, %s208
      %s226 = sphi 0, %s226
      %s228 = sphi 0, %s226
      %s229 = sphi 0, %s228
      %s243 = sphi 0, %s229
      %s247 = sphi 0, %s247
      %s249 = sphi 0, %s247
      %s250 = sphi 0, %s249
      %s264 = sphi 0, %s250
      %s270 = sphi 0, %s272
      %s273 = sphi 0, %s270
      %s274 = sphi 0, %s273
      %s290 = sphi 0, %s274
    $region4: #{tpu_custom_call.1} parent=1 // loop_header_branch
      %33 = sbr.rel (%p31) target = $region8
    $region5: #{tpu_custom_call.1} parent=1 // loop_body
      %s35 = ssub.s32 %s30, 1
      %s36 = ssub.s32 %s30, 2
      %s37 = sadd.s32 %s30, 1
      %s38 = ssub.s32 %s30, %s37
      %p39 = scmp.eq.s32.totalorder %s38, 0
      %s41 = sadd.s32 %s40, 1
      %s42 = scalar_select %p39, %s40, %s41
      %p45 = pneg %p39
      %p46 = scmp.eq.s32.totalorder %s30, 1
      %p47 = por %p45, %p46
      %p48 = scmp.ne.s32.totalorder %s40, %s43
      %p49 = scmp.eq.s32.totalorder %s30, 0
      %p50 = por %p48, %p49
      %p51 = scmp.ne.s32.totalorder %s40, %s43
      %p52 = scmp.eq.s32.totalorder %s35, 1
      %p53 = por %p51, %p52
      %p54 = scmp.ne.s32.totalorder %s43, %s44
      %p55 = scmp.eq.s32.totalorder %s35, 0
      %p56 = por %p54, %p55
      %p57 = scmp.ne.s32.totalorder %s43, %s44
      %p58 = scmp.eq.s32.totalorder %s36, 1
      %p59 = por %p57, %p58
      %p61 = scmp.ne.s32.totalorder %s44, %s60
      %p62 = scmp.eq.s32.totalorder %s36, 0
      %p63 = por %p61, %p62
      %s64 = ssub.s32 %s30, %s37
      %p65 = scmp.eq.s32.totalorder %s64, 0
      %s67 = sadd.s32 %s66, 1
      %s68 = scalar_select %p65, %s66, %s67
      %p71 = pneg %p65
      %p72 = scmp.eq.s32.totalorder %s30, 1
      %p73 = por %p71, %p72
      %p74 = scmp.ne.s32.totalorder %s66, %s69
      %p75 = scmp.eq.s32.totalorder %s30, 0
      %p76 = por %p74, %p75
      %p77 = scmp.ne.s32.totalorder %s66, %s69
      %p78 = scmp.eq.s32.totalorder %s35, 1
      %p79 = por %p77, %p78
      %p80 = scmp.ne.s32.totalorder %s69, %s70
      %p81 = scmp.eq.s32.totalorder %s35, 0
      %p82 = por %p80, %p81
      %p83 = scmp.ne.s32.totalorder %s69, %s70
      %p84 = scmp.eq.s32.totalorder %s36, 1
      %p85 = por %p83, %p84
      %p87 = scmp.ne.s32.totalorder %s70, %s86
      %p88 = scmp.eq.s32.totalorder %s36, 0
      %p89 = por %p87, %p88
      %s90 = ssub.s32 %s30, %s37
      %p91 = scmp.eq.s32.totalorder %s90, 0
      %s93 = sadd.s32 %s92, 1
      %s94 = scalar_select %p91, %s92, %s93
      %p97 = pneg %p91
      %p98 = scmp.eq.s32.totalorder %s30, 1
      %p99 = por %p97, %p98
      %p100 = scmp.ne.s32.totalorder %s92, %s95
      %p101 = scmp.eq.s32.totalorder %s30, 0
      %p102 = por %p100, %p101
      %p103 = scmp.ne.s32.totalorder %s92, %s95
      %p104 = scmp.eq.s32.totalorder %s35, 1
      %p105 = por %p103, %p104
      %p106 = scmp.ne.s32.totalorder %s95, %s96
      %p107 = scmp.eq.s32.totalorder %s35, 0
      %p108 = por %p106, %p107
      %p109 = scmp.ne.s32.totalorder %s95, %s96
      %p110 = scmp.eq.s32.totalorder %s36, 1
      %p111 = por %p109, %p110
      %p113 = scmp.ne.s32.totalorder %s96, %s112
      %p114 = scmp.eq.s32.totalorder %s36, 0
      %p115 = por %p113, %p114
      %s116 = ssub.s32 %s30, %s37
      %p117 = scmp.eq.s32.totalorder %s116, 0
      %s119 = sadd.s32 %s118, 1
      %s120 = scalar_select %p117, %s118, %s119
      %p123 = pneg %p117
      %p124 = scmp.eq.s32.totalorder %s30, 1
      %p125 = por %p123, %p124
      %p126 = scmp.ne.s32.totalorder %s118, %s121
      %p127 = scmp.eq.s32.totalorder %s30, 0
      %p128 = por %p126, %p127
      %p129 = scmp.ne.s32.totalorder %s118, %s121
      %p130 = scmp.eq.s32.totalorder %s35, 1
      %p131 = por %p129, %p130
      %p132 = scmp.ne.s32.totalorder %s121, %s122
      %p133 = scmp.eq.s32.totalorder %s35, 0
      %p134 = por %p132, %p133
      %p135 = scmp.ne.s32.totalorder %s121, %s122
      %p136 = scmp.eq.s32.totalorder %s36, 1
      %p137 = por %p135, %p136
      %p139 = scmp.ne.s32.totalorder %s122, %s138
      %p140 = scmp.eq.s32.totalorder %s36, 0
      %p141 = por %p139, %p140
      %s143 = sadd.s32 %s142, 1
      %p146 = scmp.eq.s32.totalorder %s30, 1
      %p147 = scmp.ne.s32.totalorder %s142, %s144
      %p148 = scmp.eq.s32.totalorder %s30, 0
      %p149 = por %p147, %p148
      %p150 = scmp.ne.s32.totalorder %s142, %s144
      %p151 = scmp.eq.s32.totalorder %s35, 1
      %p152 = por %p150, %p151
      %p153 = scmp.ne.s32.totalorder %s144, %s145
      %p154 = scmp.eq.s32.totalorder %s35, 0
      %p155 = por %p153, %p154
      %p156 = scmp.ne.s32.totalorder %s144, %s145
      %p157 = scmp.eq.s32.totalorder %s36, 1
      %p158 = por %p156, %p157
      %p160 = scmp.ne.s32.totalorder %s145, %s159
      %p161 = scmp.eq.s32.totalorder %s36, 0
      %p162 = por %p160, %p161
      %s164 = sadd.s32 %s163, 1
      %p167 = scmp.eq.s32.totalorder %s30, 1
      %p168 = scmp.ne.s32.totalorder %s163, %s165
      %p169 = scmp.eq.s32.totalorder %s30, 0
      %p170 = por %p168, %p169
      %p171 = scmp.ne.s32.totalorder %s163, %s165
      %p172 = scmp.eq.s32.totalorder %s35, 1
      %p173 = por %p171, %p172
      %p174 = scmp.ne.s32.totalorder %s165, %s166
      %p175 = scmp.eq.s32.totalorder %s35, 0
      %p176 = por %p174, %p175
      %p177 = scmp.ne.s32.totalorder %s165, %s166
      %p178 = scmp.eq.s32.totalorder %s36, 1
      %p179 = por %p177, %p178
      %p181 = scmp.ne.s32.totalorder %s166, %s180
      %p182 = scmp.eq.s32.totalorder %s36, 0
      %p183 = por %p181, %p182
      %s185 = sadd.s32 %s184, 1
      %p188 = scmp.eq.s32.totalorder %s30, 1
      %p189 = scmp.ne.s32.totalorder %s184, %s186
      %p190 = scmp.eq.s32.totalorder %s30, 0
      %p191 = por %p189, %p190
      %p192 = scmp.ne.s32.totalorder %s184, %s186
      %p193 = scmp.eq.s32.totalorder %s35, 1
      %p194 = por %p192, %p193
      %p195 = scmp.ne.s32.totalorder %s186, %s187
      %p196 = scmp.eq.s32.totalorder %s35, 0
      %p197 = por %p195, %p196
      %p198 = scmp.ne.s32.totalorder %s186, %s187
      %p199 = scmp.eq.s32.totalorder %s36, 1
      %p200 = por %p198, %p199
      %p202 = scmp.ne.s32.totalorder %s187, %s201
      %p203 = scmp.eq.s32.totalorder %s36, 0
      %p204 = por %p202, %p203
      %s206 = sadd.s32 %s205, 1
      %p209 = scmp.eq.s32.totalorder %s30, 1
      %p210 = scmp.ne.s32.totalorder %s205, %s207
      %p211 = scmp.eq.s32.totalorder %s30, 0
      %p212 = por %p210, %p211
      %p213 = scmp.ne.s32.totalorder %s205, %s207
      %p214 = scmp.eq.s32.totalorder %s35, 1
      %p215 = por %p213, %p214
      %p216 = scmp.ne.s32.totalorder %s207, %s208
      %p217 = scmp.eq.s32.totalorder %s35, 0
      %p218 = por %p216, %p217
      %p219 = scmp.ne.s32.totalorder %s207, %s208
      %p220 = scmp.eq.s32.totalorder %s36, 1
      %p221 = por %p219, %p220
      %p223 = scmp.ne.s32.totalorder %s208, %s222
      %p224 = scmp.eq.s32.totalorder %s36, 0
      %p225 = por %p223, %p224
      %s227 = sadd.s32 %s226, 1
      %p230 = scmp.eq.s32.totalorder %s30, 1
      %p231 = scmp.ne.s32.totalorder %s226, %s228
      %p232 = scmp.eq.s32.totalorder %s30, 0
      %p233 = por %p231, %p232
      %p234 = scmp.ne.s32.totalorder %s226, %s228
      %p235 = scmp.eq.s32.totalorder %s35, 1
      %p236 = por %p234, %p235
      %p237 = scmp.ne.s32.totalorder %s228, %s229
      %p238 = scmp.eq.s32.totalorder %s35, 0
      %p239 = por %p237, %p238
      %p240 = scmp.ne.s32.totalorder %s228, %s229
      %p241 = scmp.eq.s32.totalorder %s36, 1
      %p242 = por %p240, %p241
      %p244 = scmp.ne.s32.totalorder %s229, %s243
      %p245 = scmp.eq.s32.totalorder %s36, 0
      %p246 = por %p244, %p245
      %s248 = sadd.s32 %s247, 1
      %p251 = scmp.eq.s32.totalorder %s30, 1
      %p252 = scmp.ne.s32.totalorder %s247, %s249
      %p253 = scmp.eq.s32.totalorder %s30, 0
      %p254 = por %p252, %p253
      %p255 = scmp.ne.s32.totalorder %s247, %s249
      %p256 = scmp.eq.s32.totalorder %s35, 1
      %p257 = por %p255, %p256
      %p258 = scmp.ne.s32.totalorder %s249, %s250
      %p259 = scmp.eq.s32.totalorder %s35, 0
      %p260 = por %p258, %p259
      %p261 = scmp.ne.s32.totalorder %s249, %s250
      %p262 = scmp.eq.s32.totalorder %s36, 1
      %p263 = por %p261, %p262
      %p265 = scmp.ne.s32.totalorder %s250, %s264
      %p266 = scmp.eq.s32.totalorder %s36, 0
      %p267 = por %p265, %p266
      %s268 = ssub.s32 %s30, %s37
      %p269 = scmp.eq.s32.totalorder %s268, 0
      %s271 = sadd.s32 %s270, 1
      %s272 = scalar_select %p269, %s270, %s271
      %p275 = pneg %p269
      %p276 = scmp.eq.s32.totalorder %s30, 1
      %p277 = por %p275, %p276
      %p278 = scmp.ne.s32.totalorder %s270, %s273
      %p279 = scmp.eq.s32.totalorder %s30, 0
      %p280 = por %p278, %p279
      %p281 = scmp.ne.s32.totalorder %s270, %s273
      %p282 = scmp.eq.s32.totalorder %s35, 1
      %p283 = por %p281, %p282
      %p284 = scmp.ne.s32.totalorder %s273, %s274
      %p285 = scmp.eq.s32.totalorder %s35, 0
      %p286 = por %p284, %p285
      %p287 = scmp.ne.s32.totalorder %s273, %s274
      %p288 = scmp.eq.s32.totalorder %s36, 1
      %p289 = por %p287, %p288
      %p291 = scmp.ne.s32.totalorder %s274, %s290
      %p292 = scmp.eq.s32.totalorder %s36, 0
      %p293 = por %p291, %p292
      %p294 = scmp.le.s32.totalorder 1, %s30
      %p295 = scmp.lt.s32.totalorder %s30, 3
      %p296 = pnand %p294, %p295
      %p297 = pneg %p296
      // Predicated region
      $region9: #{tpu_custom_call.1} parent=5 // pred_check
        _
      $region10: #{tpu_custom_call.1} parent=5 // pred_check_branch
        %299 = sbr.rel (%p296) target = $region12
      $region11: #{tpu_custom_call.1} parent=5 // pred_region
        %s300 = ssub.s32 %s30, 1
        // Predicated region
        $region13: #{tpu_custom_call.1} parent=11 // pred_check
          %p301 = pneg %p155
        $region14: #{tpu_custom_call.1} parent=11 // pred_check_branch
          %303 = sbr.rel (%p301) target = $region16
        $region15: #{tpu_custom_call.1} parent=11 // pred_region
          %305 = vsyncadd [#allocation10], 0
          %s306 = sshll.u32 %s4, 4
          %s307 = int_to_ptr.hbm [resolvable:$true] %s306
          %s308 = sshll.u32 [#allocation11], 4
          %s309 = int_to_ptr.vmem [resolvable:$true] %s308
          %314 = dma.hbm_to_vmem [thread:$0]  %s307, 256, %s309, [#allocation10], 64, 64, 4
        $region16: #{tpu_custom_call.1} parent=11 // pred_fallthru
          _
        // Predicated region
        $region17: #{tpu_custom_call.1} parent=11 // pred_check
          %p315 = pneg %p176
        $region18: #{tpu_custom_call.1} parent=11 // pred_check_branch
          %317 = sbr.rel (%p315) target = $region20
        $region19: #{tpu_custom_call.1} parent=11 // pred_region
          %319 = vsyncadd [#allocation13], 0
          %s320 = sshll.u32 %s5, 4
          %s321 = int_to_ptr.hbm [resolvable:$true] %s320
          %s322 = sshll.u32 [#allocation12], 4
          %s323 = int_to_ptr.vmem [resolvable:$true] %s322
          %328 = dma.hbm_to_vmem [thread:$0]  %s321, 256, %s323, [#allocation13], 64, 64, 4
        $region20: #{tpu_custom_call.1} parent=11 // pred_fallthru
          _
        // Predicated region
        $region21: #{tpu_custom_call.1} parent=11 // pred_check
          %p329 = pneg %p197
        $region22: #{tpu_custom_call.1} parent=11 // pred_check_branch
          %331 = sbr.rel (%p329) target = $region24
        $region23: #{tpu_custom_call.1} parent=11 // pred_region
          %333 = vsyncadd [#allocation13], 0
          %s334 = sshll.u32 %s6, 4
          %s335 = int_to_ptr.hbm [resolvable:$true] %s334
          %s336 = sshll.u32 [#allocation14], 4
          %s337 = int_to_ptr.vmem [resolvable:$true] %s336
          %342 = dma.hbm_to_vmem [thread:$0]  %s335, 512, %s337, [#allocation13], 128, 128, 8
        $region24: #{tpu_custom_call.1} parent=11 // pred_fallthru
          _
        // Predicated region
        $region25: #{tpu_custom_call.1} parent=11 // pred_check
          %p343 = pneg %p218
        $region26: #{tpu_custom_call.1} parent=11 // pred_check_branch
          %345 = sbr.rel (%p343) target = $region28
        $region27: #{tpu_custom_call.1} parent=11 // pred_region
          %347 = vsyncadd [#allocation16], 0
          %s348 = sshll.u32 %s7, 4
          %s349 = int_to_ptr.hbm [resolvable:$true] %s348
          %s350 = sshll.u32 [#allocation15], 4
          %s351 = int_to_ptr.vmem [resolvable:$true] %s350
          %356 = dma.hbm_to_vmem [thread:$0]  %s349, 512, %s351, [#allocation16], 128, 128, 8
        $region28: #{tpu_custom_call.1} parent=11 // pred_fallthru
          _
        // Predicated region
        $region29: #{tpu_custom_call.1} parent=11 // pred_check
          %p357 = pneg %p239
        $region30: #{tpu_custom_call.1} parent=11 // pred_check_branch
          %359 = sbr.rel (%p357) target = $region32
        $region31: #{tpu_custom_call.1} parent=11 // pred_region
          _
        $region32: #{tpu_custom_call.1} parent=11 // pred_fallthru
          _
        // Predicated region
        $region33: #{tpu_custom_call.1} parent=11 // pred_check
          %p360 = pneg %p260
        $region34: #{tpu_custom_call.1} parent=11 // pred_check_branch
          %362 = sbr.rel (%p360) target = $region36
        $region35: #{tpu_custom_call.1} parent=11 // pred_region
          _
        $region36: #{tpu_custom_call.1} parent=11 // pred_fallthru
          _
      $region12: #{tpu_custom_call.1} parent=5 // pred_fallthru
        _
      %p363 = scmp.lt.s32.totalorder %s30, 2
      // Predicated region
      $region37: #{tpu_custom_call.1} parent=5 // pred_check
        %p364 = pneg %p363
      $region38: #{tpu_custom_call.1} parent=5 // pred_check_branch
        %366 = sbr.rel (%p364) target = $region40
      $region39: #{tpu_custom_call.1} parent=5 // pred_region
        // Predicated region
        $region41: #{tpu_custom_call.1} parent=39 // pred_check
          %p367 = pneg %p50
        $region42: #{tpu_custom_call.1} parent=39 // pred_check_branch
          %369 = sbr.rel (%p367) target = $region44
        $region43: #{tpu_custom_call.1} parent=39 // pred_region
          %s370 = sand.u32 %s40, 1
          %s371 = scalar_lea.sflag [#allocation4], %s370
          %s372 = sand.u32 %s40, 1
          %s373 = smul.addr %s372, 4
          %s374 = scalar_lea.vmem [#allocation3], %s373
          %376 = vsyncadd %s371, 0
          %s377 = smul.addr %s30, 4
          %s378 = scalar_lea.hbm %s0, %s377
          %s380 = sshll.u32 %s378, 4
          %s381 = int_to_ptr.hbm [resolvable:$true] %s380
          %s382 = sshll.u32 %s374, 4
          %s383 = int_to_ptr.vmem [resolvable:$true] %s382
          %385 = dma.hbm_to_vmem [thread:$0]  %s381, 64, %s383, %s371
        $region44: #{tpu_custom_call.1} parent=39 // pred_fallthru
          _
        // Predicated region
        $region45: #{tpu_custom_call.1} parent=39 // pred_check
          %p386 = pneg %p76
        $region46: #{tpu_custom_call.1} parent=39 // pred_check_branch
          %388 = sbr.rel (%p386) target = $region48
        $region47: #{tpu_custom_call.1} parent=39 // pred_region
          %s389 = sand.u32 %s30, 1
          %s390 = scalar_lea.sflag [#allocation7], %s389
          %s391 = sand.u32 %s66, 1
          %s392 = smul.addr %s391, 8
          %s393 = scalar_lea.vmem [#allocation6], %s392
          %395 = vsyncadd %s390, 0
          %s396 = smul.addr %s30, 2
          %s397 = smul.addr %s396, 4
          %s398 = scalar_lea.hbm %s1, %s397
          %s399 = sshll.u32 %s398, 4
          %s400 = int_to_ptr.hbm [resolvable:$true] %s399
          %s401 = sshll.u32 %s393, 4
          %s402 = int_to_ptr.vmem [resolvable:$true] %s401
          %407 = dma.hbm_to_vmem [thread:$0]  %s400, 128, %s402, %s390, 64, 64, 4
        $region48: #{tpu_custom_call.1} parent=39 // pred_fallthru
          _
        // Predicated region
        $region49: #{tpu_custom_call.1} parent=39 // pred_check
          %p408 = pneg %p102
        $region50: #{tpu_custom_call.1} parent=39 // pred_check_branch
          %410 = sbr.rel (%p408) target = $region52
        $region51: #{tpu_custom_call.1} parent=39 // pred_region
          %s411 = sand.u32 %s30, 1
          %s412 = scalar_lea.sflag [#allocation7], %s411
          %s413 = sand.u32 %s92, 1
          %s414 = smul.addr %s413, 8
          %s415 = scalar_lea.vmem [#allocation8], %s414
          %417 = vsyncadd %s412, 0
          %s418 = smul.addr %s30, 2
          %s419 = smul.addr %s418, 4
          %s420 = scalar_lea.hbm %s2, %s419
          %s421 = sshll.u32 %s420, 4
          %s422 = int_to_ptr.hbm [resolvable:$true] %s421
          %s423 = sshll.u32 %s415, 4
          %s424 = int_to_ptr.vmem [resolvable:$true] %s423
          %429 = dma.hbm_to_vmem [thread:$0]  %s422, 128, %s424, %s412, 64, 64, 4
        $region52: #{tpu_custom_call.1} parent=39 // pred_fallthru
          _
        // Predicated region
        $region53: #{tpu_custom_call.1} parent=39 // pred_check
          %p430 = pneg %p128
        $region54: #{tpu_custom_call.1} parent=39 // pred_check_branch
          %432 = sbr.rel (%p430) target = $region56
        $region55: #{tpu_custom_call.1} parent=39 // pred_region
          %s433 = sand.u32 %s30, 1
          %s434 = scalar_lea.sflag [#allocation10], %s433
          %s435 = sand.u32 %s118, 1
          %s436 = smul.addr %s435, 8
          %s437 = scalar_lea.vmem [#allocation9], %s436
          %439 = vsyncadd %s434, 0
          %s440 = smul.addr %s30, 8
          %s441 = scalar_lea.hbm %s3, %s440
          %s443 = sshll.u32 %s441, 4
          %s444 = int_to_ptr.hbm [resolvable:$true] %s443
          %s445 = sshll.u32 %s437, 4
          %s446 = int_to_ptr.vmem [resolvable:$true] %s445
          %448 = dma.hbm_to_vmem [thread:$0]  %s444, 128, %s446, %s434
        $region56: #{tpu_custom_call.1} parent=39 // pred_fallthru
          _
      $region40: #{tpu_custom_call.1} parent=5 // pred_fallthru
        _
      %p449 = scmp.le.s32.totalorder 1, %s30
      %p450 = scmp.lt.s32.totalorder %s30, 3
      %p451 = pnand %p449, %p450
      %p452 = pneg %p451
      // Predicated region
      $region57: #{tpu_custom_call.1} parent=5 // pred_check
        _
      $region58: #{tpu_custom_call.1} parent=5 // pred_check_branch
        %454 = sbr.rel (%p451) target = $region60
      $region59: #{tpu_custom_call.1} parent=5 // pred_region
        %s455 = ssub.s32 %s30, 1
        %s456 = sand.u32 %s43, 1
        %s457 = scalar_lea.sflag [#allocation4], %s456
        %s458 = sand.u32 %s43, 1
        %s459 = smul.addr %s458, 4
        %s460 = scalar_lea.vmem [#allocation3], %s459
        // Predicated region
        $region61: #{tpu_custom_call.1} parent=59 // pred_check
          %p461 = pneg %p56
        $region62: #{tpu_custom_call.1} parent=59 // pred_check_branch
          %463 = sbr.rel (%p461) target = $region64
        $region63: #{tpu_custom_call.1} parent=59 // pred_region
          %465 = dma.done %s457, 64
        $region64: #{tpu_custom_call.1} parent=59 // pred_fallthru
          _
        %s466 = sand.u32 %s35, 1
        %s467 = scalar_lea.sflag [#allocation7], %s466
        %s468 = sand.u32 %s69, 1
        %s469 = smul.addr %s468, 8
        %s470 = scalar_lea.vmem [#allocation6], %s469
        // Predicated region
        $region65: #{tpu_custom_call.1} parent=59 // pred_check
          %p471 = pneg %p82
        $region66: #{tpu_custom_call.1} parent=59 // pred_check_branch
          %473 = sbr.rel (%p471) target = $region68
        $region67: #{tpu_custom_call.1} parent=59 // pred_region
          %475 = dma.done %s467, 128
        $region68: #{tpu_custom_call.1} parent=59 // pred_fallthru
          _
        %s476 = sand.u32 %s35, 1
        %s477 = scalar_lea.sflag [#allocation7], %s476
        %s478 = sand.u32 %s95, 1
        %s479 = smul.addr %s478, 8
        %s480 = scalar_lea.vmem [#allocation8], %s479
        // Predicated region
        $region69: #{tpu_custom_call.1} parent=59 // pred_check
          %p481 = pneg %p108
        $region70: #{tpu_custom_call.1} parent=59 // pred_check_branch
          %483 = sbr.rel (%p481) target = $region72
        $region71: #{tpu_custom_call.1} parent=59 // pred_region
          %485 = dma.done %s477, 128
        $region72: #{tpu_custom_call.1} parent=59 // pred_fallthru
          _
        %s486 = sand.u32 %s35, 1
        %s487 = scalar_lea.sflag [#allocation10], %s486
        %s488 = sand.u32 %s121, 1
        %s489 = smul.addr %s488, 8
        %s490 = scalar_lea.vmem [#allocation9], %s489
        // Predicated region
        $region73: #{tpu_custom_call.1} parent=59 // pred_check
          %p491 = pneg %p134
        $region74: #{tpu_custom_call.1} parent=59 // pred_check_branch
          %493 = sbr.rel (%p491) target = $region76
        $region75: #{tpu_custom_call.1} parent=59 // pred_region
          %495 = dma.done %s487, 128
        $region76: #{tpu_custom_call.1} parent=59 // pred_fallthru
          _
        // Predicated region
        $region77: #{tpu_custom_call.1} parent=59 // pred_check
          %p496 = pneg %p155
        $region78: #{tpu_custom_call.1} parent=59 // pred_check_branch
          %498 = sbr.rel (%p496) target = $region80
        $region79: #{tpu_custom_call.1} parent=59 // pred_region
          %500 = dma.done [#allocation10], 256
        $region80: #{tpu_custom_call.1} parent=59 // pred_fallthru
          _
        // Predicated region
        $region81: #{tpu_custom_call.1} parent=59 // pred_check
          %p501 = pneg %p176
        $region82: #{tpu_custom_call.1} parent=59 // pred_check_branch
          %503 = sbr.rel (%p501) target = $region84
        $region83: #{tpu_custom_call.1} parent=59 // pred_region
          %505 = dma.done [#allocation13], 256
        $region84: #{tpu_custom_call.1} parent=59 // pred_fallthru
          _
        // Predicated region
        $region85: #{tpu_custom_call.1} parent=59 // pred_check
          %p506 = pneg %p197
        $region86: #{tpu_custom_call.1} parent=59 // pred_check_branch
          %508 = sbr.rel (%p506) target = $region88
        $region87: #{tpu_custom_call.1} parent=59 // pred_region
          %510 = dma.done [#allocation13], 512
        $region88: #{tpu_custom_call.1} parent=59 // pred_fallthru
          _
        // Predicated region
        $region89: #{tpu_custom_call.1} parent=59 // pred_check
          %p511 = pneg %p218
        $region90: #{tpu_custom_call.1} parent=59 // pred_check_branch
          %513 = sbr.rel (%p511) target = $region92
        $region91: #{tpu_custom_call.1} parent=59 // pred_region
          %515 = dma.done [#allocation16], 512
        $region92: #{tpu_custom_call.1} parent=59 // pred_fallthru
          _
        %s516 = sand.u32 %s43, 1
        %s517 = scalar_lea.sflag [#allocation4], %s516
        %s518 = sand.u32 %s43, 1
        %s519 = smul.addr %s518, 4
        %s520 = scalar_lea.vmem [#allocation3], %s519
        %p521 = pneg %p56
        %p522 = pneg %p53
        %s523 = sand.u32 %s35, 1
        %s524 = scalar_lea.sflag [#allocation7], %s523
        %s525 = sand.u32 %s69, 1
        %s526 = smul.addr %s525, 8
        %s527 = scalar_lea.vmem [#allocation6], %s526
        %p528 = pneg %p82
        %p529 = pneg %p79
        %s530 = sand.u32 %s35, 1
        %s531 = scalar_lea.sflag [#allocation7], %s530
        %s532 = sand.u32 %s95, 1
        %s533 = smul.addr %s532, 8
        %s534 = scalar_lea.vmem [#allocation8], %s533
        %p535 = pneg %p108
        %p536 = pneg %p105
        %s537 = sand.u32 %s35, 1
        %s538 = scalar_lea.sflag [#allocation10], %s537
        %s539 = sand.u32 %s121, 1
        %s540 = smul.addr %s539, 8
        %s541 = scalar_lea.vmem [#allocation9], %s540
        %p542 = pneg %p134
        %p543 = pneg %p131
        %p544 = pneg %p155
        %p545 = pneg %p152
        %p546 = pneg %p176
        %p547 = pneg %p173
        %p548 = pneg %p197
        %p549 = pneg %p194
        %p550 = pneg %p218
        %p551 = pneg %p215
        %p552 = pneg %p239
        %p553 = pneg %p236
        %p554 = pneg %p260
        %p555 = pneg %p257
        %p556 = pneg %p286
        %p557 = pneg %p283
        %s558 = sand.u32 %s273, 1
        %s559 = scalar_lea.sflag [#allocation5], %s558
        %s560 = sand.u32 %s273, 1
        %s561 = smul.addr %s560, 8
        %s562 = scalar_lea.vmem [#allocation17], %s561
        %v564 = vld [vmem:[%s470] sm:$0xf]
        %v565 = vld [vmem:[%s470 + $0x4] sm:$0xf]
        %v566 = vld [vmem:[#allocation11] sm:$0xf]
        %v567 = vld [vmem:[#allocation11 + $0x4] sm:$0xf]
        %v568 = vld [vmem:[#allocation11 + $0x8] sm:$0xf]
        %v569 = vld [vmem:[#allocation11 + $0xc] sm:$0xf]
        %v572 = vunpack.c.l.b16 %v564
        %v573 = vunpack.c.l.b16 %v565
        %v574 = vpack.c.b16 %v573, %v572
        %v579 = vunpack.c.l.b16 %v566
        %v580 = vunpack.c.l.b16 %v567
        %v581 = vunpack.c.l.b16 %v568
        %v582 = vunpack.c.l.b16 %v569
        %v583 = vpack.c.b16 %v580, %v579
        %v584 = vpack.c.b16 %v582, %v581
        %vm587 = vcmask 261120
        %v589 = vsel %vm587, %v574, 0
        %591 = vmatpush.bf16.msra.mxu0 0
        %592 = vmatpush.bf16.msra.mxu0 0
        %593 = vmatpush.bf16.msra.mxu0 0
        %594 = vmatpush.bf16.msra.mxu0 0
        %595 = vmatpush.bf16.msra.mxu0 0
        %596 = vmatpush.bf16.msra.mxu0 0
        %597 = vmatpush.bf16.msra.mxu0 %v584
        %598 = vmatpush.bf16.msra.mxu0 %v583
        %599 = vmatmul.bf16.gmra.mxu0 %v589
        %v600 = vpop.f32.mrf.mxu0
        %v601 = vadd.f32 0.0, %v600
        %v602 = vpop.f32.mrf.mxu0
        %v603 = vadd.f32 0.0, %v602
        %604 = vdwg.mxu0
        %v605 = vld [vmem:[%s480] sm:$0xf]
        %v606 = vld [vmem:[%s480 + $0x4] sm:$0xf]
        %v607 = vld [vmem:[#allocation12] sm:$0xf]
        %v608 = vld [vmem:[#allocation12 + $0x4] sm:$0xf]
        %v609 = vld [vmem:[#allocation12 + $0x8] sm:$0xf]
        %v610 = vld [vmem:[#allocation12 + $0xc] sm:$0xf]
        %v613 = vunpack.c.l.b16 %v605
        %v614 = vunpack.c.l.b16 %v606
        %v615 = vpack.c.b16 %v614, %v613
        %v620 = vunpack.c.l.b16 %v607
        %v621 = vunpack.c.l.b16 %v608
        %v622 = vunpack.c.l.b16 %v609
        %v623 = vunpack.c.l.b16 %v610
        %v624 = vpack.c.b16 %v621, %v620
        %v625 = vpack.c.b16 %v623, %v622
        %v629 = vsel %vm587, %v615, 0
        %631 = vmatpush.bf16.msra.mxu0 0
        %632 = vmatpush.bf16.msra.mxu0 0
        %633 = vmatpush.bf16.msra.mxu0 0
        %634 = vmatpush.bf16.msra.mxu0 0
        %635 = vmatpush.bf16.msra.mxu0 0
        %636 = vmatpush.bf16.msra.mxu0 0
        %637 = vmatpush.bf16.msra.mxu0 %v625
        %638 = vmatpush.bf16.msra.mxu0 %v624
        %639 = vmatmul.bf16.gmra.mxu0 %v629
        %v640 = vpop.f32.mrf.mxu0
        %v641 = vadd.f32 0.0, %v640
        %v642 = vpop.f32.mrf.mxu0
        %v643 = vadd.f32 0.0, %v642
        %644 = vdwg.mxu0
        %vm645 = vcmask 785408
        %646 = vst.msk [vmem:[#allocation2] sm:$0xff] %vm645, %v601
        %647 = vst.msk [vmem:[#allocation2 + $0x8] sm:$0xff] %vm645, %v603
        %648 = vst.msk [vmem:[#allocation2 + $0x10] sm:$0xff] %vm645, %v641
        %649 = vst.msk [vmem:[#allocation2 + $0x18] sm:$0xff] %vm645, %v643
        %v650 = vld [vmem:[%s460] sm:$0xf]
        %v651 = vunpack.c.l.bf16 %v650
        %v652 = vld [vmem:[#allocation2] sm:$0xff]
        %v653 = vld [vmem:[#allocation2 + $0x8] sm:$0xff]
        %v654 = vld [vmem:[#allocation2 + $0x10] sm:$0xff]
        %v655 = vld [vmem:[#allocation2 + $0x18] sm:$0xff]
        %v657 = vsel %vm587, %v651, 0
        %659 = vmatpush.msra.mxu0 0.0
        %660 = vmatpush.msra.mxu0 0.0
        %661 = vmatpush.msra.mxu0 0.0
        %662 = vmatpush.msra.mxu0 0.0
        %663 = vmatpush.msra.mxu0 0.0
        %664 = vmatpush.msra.mxu0 0.0
        %665 = vmatpush.msra.mxu0 0.0
        %666 = vmatpush.msra.mxu0 0.0
        %667 = vmatpush.msra.mxu0 0.0
        %668 = vmatpush.msra.mxu0 0.0
        %669 = vmatpush.msra.mxu0 0.0
        %670 = vmatpush.msra.mxu0 0.0
        %671 = vmatpush.msra.mxu0 %v655
        %672 = vmatpush.msra.mxu0 %v654
        %673 = vmatpush.msra.mxu0 %v653
        %674 = vmatpush.msra.mxu0 %v652
        %675 = vmatmul.f32.gmra.mxu0 %v657
        %v676 = vpop.f32.mrf.mxu0
        %v677 = vadd.f32 0.0, %v676
        %678 = vdwg.mxu0
        %v679 = vld [vmem:[%s490] sm:$0xff]
        %v680 = vld [vmem:[#allocation14] sm:$0xff]
        %v681 = vld [vmem:[#allocation14 + $0x8] sm:$0xff]
        %v682 = vld [vmem:[#allocation14 + $0x10] sm:$0xff]
        %v683 = vld [vmem:[#allocation14 + $0x18] sm:$0xff]
        %v685 = vsel %vm587, %v679, 0
        %687 = vmatpush.msra.mxu0 0.0
        %688 = vmatpush.msra.mxu0 0.0
        %689 = vmatpush.msra.mxu0 0.0
        %690 = vmatpush.msra.mxu0 0.0
        %691 = vmatpush.msra.mxu0 0.0
        %692 = vmatpush.msra.mxu0 0.0
        %693 = vmatpush.msra.mxu0 0.0
        %694 = vmatpush.msra.mxu0 0.0
        %695 = vmatpush.msra.mxu0 0.0
        %696 = vmatpush.msra.mxu0 0.0
        %697 = vmatpush.msra.mxu0 0.0
        %698 = vmatpush.msra.mxu0 0.0
        %699 = vmatpush.msra.mxu0 %v683
        %700 = vmatpush.msra.mxu0 %v682
        %701 = vmatpush.msra.mxu0 %v681
        %702 = vmatpush.msra.mxu0 %v680
        %703 = vmatmul.f32.gmra.mxu0 %v685
        %v704 = vpop.f32.mrf.mxu0
        %v705 = vadd.f32 0.0, %v704
        %706 = vdwg.mxu0
        %v707 = vadd.f32 %v677, %v705
        %v708 = vld [vmem:[%s8] sm:$0x1]
        %v710 = vperm.slane %v708, 0
        %v712 = vadd.f32 %v707, %v710
        %v713 = vxor.u32 %v712, 2147483648
        %v714 = vmul.f32 %v713, 1.442695
        %v715 = vpow.pop %v714
        %v716 = vadd.f32 %v715, 1.0
        %v717 = vrcp.pop %v716
        %v718 = vmul.f32 %v716, %v717
        %v719 = vsub.f32 1.0, %v718
        %v720 = vmul.f32 %v717, %v719
        %v721 = vadd.f32 %v717, %v720
        %vm722 = vweird.f32 %v716
        %vm723 = vweird.f32 %v717
        %vm724 = vmor %vm722, %vm723
        %v725 = vsel %vm724, %v717, %v721
        %v726 = vand.u32 2147483647, %v716
        %vm727 = vcmp.eq.f32.partialorder %v726, 8.507059e+37
        %v728 = vand.u32 %v716, 2147483648
        %v729 = vor.u32 1.1754944e-38, %v728
        %v730 = vsel %vm727, %v729, %v725
        %v731 = vmul.f32 1.0, %v730
        %v732 = vmul.f32 %v731, %v679
        %v733 = vld [vmem:[#allocation15] sm:$0xff]
        %v734 = vld [vmem:[#allocation15 + $0x8] sm:$0xff]
        %v735 = vld [vmem:[#allocation15 + $0x10] sm:$0xff]
        %v736 = vld [vmem:[#allocation15 + $0x18] sm:$0xff]
        %v738 = vsel %vm587, %v732, 0
        %740 = vmatpush.msra.mxu0 0.0
        %741 = vmatpush.msra.mxu0 0.0
        %742 = vmatpush.msra.mxu0 0.0
        %743 = vmatpush.msra.mxu0 0.0
        %744 = vmatpush.msra.mxu0 0.0
        %745 = vmatpush.msra.mxu0 0.0
        %746 = vmatpush.msra.mxu0 0.0
        %747 = vmatpush.msra.mxu0 0.0
        %748 = vmatpush.msra.mxu0 0.0
        %749 = vmatpush.msra.mxu0 0.0
        %750 = vmatpush.msra.mxu0 0.0
        %751 = vmatpush.msra.mxu0 0.0
        %752 = vmatpush.msra.mxu0 %v736
        %753 = vmatpush.msra.mxu0 %v735
        %754 = vmatpush.msra.mxu0 %v734
        %755 = vmatpush.msra.mxu0 %v733
        %756 = vmatmul.f32.gmra.mxu0 %v738
        %v757 = vpop.f32.mrf.mxu0
        %v758 = vadd.f32 0.0, %v757
        %759 = vdwg.mxu0
        %761 = vrot.lane.b32.xlu0 %v758, 64
        %v762 = vpop.permute.xlu0 %761
        %v764 = vadd.f32 %v677, %v762
        %v765 = vld [vmem:[%s9] sm:$0x1]
        %v767 = vperm.slane %v765, 0
        %768 = vrot.lane.b32.xlu0 %v767, 64
        %v769 = vpop.permute.xlu0 %768
        %v771 = vadd.f32 %v764, %v769
        %vm772 = vcmp.ge.f32.partialorder %v771, 0.0
        %v773 = vmul.f32 %v771, 0.01
        %v774 = vsel %vm772, %v771, %v773
        %v775 = vsub.f32 1.0, %v731
        %776 = vrot.lane.b32.xlu0 %v679, 32
        %v777 = vpop.permute.xlu0 %776
        %v779 = vmul.f32 %v775, %v777
        %781 = vrot.lane.b32.xlu0 %v774, 96
        %v782 = vpop.permute.xlu0 %781
        %v784 = vmul.f32 %v731, %v782
        %v785 = vadd.f32 %v779, %v784
        %787 = vrot.lane.b32.xlu0 %v785, 96
        %v788 = vpop.permute.xlu0 %787
        %790 = vst.msk [vmem:[%s562] sm:$0xff] %vm587, %v788
        %s791 = sand.u32 %s273, 1
        %s792 = scalar_lea.sflag [#allocation5], %s791
        %s793 = sand.u32 %s273, 1
        %s794 = smul.addr %s793, 8
        %s795 = scalar_lea.vmem [#allocation17], %s794
        // Predicated region
        $region93: #{tpu_custom_call.1} parent=59 // pred_check
          %p796 = pneg %p283
        $region94: #{tpu_custom_call.1} parent=59 // pred_check_branch
          %798 = sbr.rel (%p796) target = $region96
        $region95: #{tpu_custom_call.1} parent=59 // pred_region
          %800 = vsyncadd %s792, 0
          %s801 = smul.addr %s35, 8
          %s802 = scalar_lea.hbm %s10, %s801
          %s804 = sshll.u32 %s795, 4
          %s805 = int_to_ptr.vmem [resolvable:$true] %s804
          %s806 = sshll.u32 %s802, 4
          %s807 = int_to_ptr.hbm [resolvable:$true] %s806
          %809 = dma.vmem_to_hbm [thread:$0]  %s805, 128, %s807, %s792
        $region96: #{tpu_custom_call.1} parent=59 // pred_fallthru
          _
      $region60: #{tpu_custom_call.1} parent=5 // pred_fallthru
        _
      %p810 = scmp.le.s32.totalorder 2, %s30
      // Predicated region
      $region97: #{tpu_custom_call.1} parent=5 // pred_check
        %p811 = pneg %p810
      $region98: #{tpu_custom_call.1} parent=5 // pred_check_branch
        %813 = sbr.rel (%p811) target = $region100
      $region99: #{tpu_custom_call.1} parent=5 // pred_region
        %s814 = ssub.s32 %s30, 2
        // Predicated region
        $region101: #{tpu_custom_call.1} parent=99 // pred_check
          %p815 = pneg %p289
        $region102: #{tpu_custom_call.1} parent=99 // pred_check_branch
          %817 = sbr.rel (%p815) target = $region104
        $region103: #{tpu_custom_call.1} parent=99 // pred_region
          %s818 = sand.u32 %s274, 1
          %s819 = scalar_lea.sflag [#allocation5], %s818
          %s820 = sand.u32 %s274, 1
          %s821 = smul.addr %s820, 8
          %s822 = scalar_lea.vmem [#allocation17], %s821
          %824 = dma.done %s819, 128
        $region104: #{tpu_custom_call.1} parent=99 // pred_fallthru
          _
      $region100: #{tpu_custom_call.1} parent=5 // pred_fallthru
        _
    $region6: #{tpu_custom_call.1} parent=1 // loop_footer
      %s34 = sadd.s32 1, %s30
    $region7: #{tpu_custom_call.1} parent=1 // loop_footer_branch
      %29 = sbr.rel target = $region3
    $region8: #{tpu_custom_call.1} parent=1 // loop_exit
      _
    %825 = vsyncpa [#allocation4], 1
    %s826 = scalar_lea.sflag [#allocation4], 1
    %827 = vsyncpa %s826, 1
    %828 = vsyncpa [#allocation7], 1
    %s829 = scalar_lea.sflag [#allocation7], 1
    %830 = vsyncpa %s829, 1
    %831 = vsyncpa [#allocation10], 1
    %s832 = scalar_lea.sflag [#allocation10], 1
    %833 = vsyncpa %s832, 1
    %834 = vsyncpa [#allocation13], 1
    %835 = vsyncpa [#allocation16], 1
    %836 = vsyncpa [#allocation5], 1
    %s837 = scalar_lea.sflag [#allocation5], 1
    %838 = vsyncpa %s837, 1

</llo_original>
